<compile_context>
chip_gen: v7x
topology: tpu7x:2x2x1
jax: 0.10.0
libtpu: 0.0.40
codegen_flags: <defaults>
</compile_context>

<pallas_src>
import jax
import jax.numpy as jnp
from jax.experimental import pallas as pl
from jax.experimental.pallas import tpu as pltpu

# constants (stand-ins for code/constant.py)
HIDDEN_SIZE = 32
PAD_ID = 0


def self_attentive_kernel(ids_ref, lstm_ref, w1t_ref, w2_ref, out_ref):
    # ids_ref : (TB, L)    int32     lstm_ref: (TB, L, H) f32
    # w1t_ref : (H, H)     f32 (W1 already transposed)
    # w2_ref  : (1, H)     f32
    # out_ref : (TB, H)    f32
    tb, L, H = lstm_ref.shape
    lstm = lstm_ref[...]                                                  # (TB, L, H)

    # hbar = tanh(lstm @ W1^T); W1 pre-transposed in wrapper -> plain matmul.
    hbar = jnp.tanh(
        jnp.dot(lstm.reshape(tb * L, H), w1t_ref[...],
                preferred_element_type=jnp.float32)
    ).reshape(tb, L, H)                                                   # (TB, L, H)

    # ws2 as VPU broadcast-multiply + lane reduction: scores already (TB, L),
    # no N=1 matmul and no (L,1)->(1,L) transpose.
    scores = jnp.sum(hbar * w2_ref[...], axis=-1)                         # (TB, L)

    # additive PAD mask (same -10000 penalty as the PyTorch code)
    mask = jnp.where(ids_ref[...] == PAD_ID, -10000.0, 0.0).astype(jnp.float32)
    scores = scores + mask                                                # (TB, L)

    # softmax over the sequence axis
    m = jnp.max(scores, axis=-1, keepdims=True)
    e = jnp.exp(scores - m)
    alphas = e / jnp.sum(e, axis=-1, keepdims=True)                       # (TB, L)

    # attention-weighted sum over L: VPU multiply + reduce (no M=1 matmul)
    out_ref[...] = jnp.sum(alphas[:, :, None] * lstm, axis=1)             # (TB, H)


def self_attentive_encoder(inp, lstm_output, shape, w1, w2, *, tb=None):
    """inp: (B, L) int, lstm_output: (B, L, H) f32 -> (shape[0], shape[1], H)."""
    B, L, H = lstm_output.shape

    if tb is None:
        # One block for small B; 64-sequence tiles (multiple of 8 sublanes) for
        # large B, which also leaves >=2 parallel blocks for v7x's two TCs.
        tb = B if B <= 64 else 64

    # Pad the batch so it divides evenly into TB-sized blocks. Padded rows are
    # all-PAD ids + zero lstm states, so they are harmless and sliced off below.
    num_blocks = pl.cdiv(B, tb)
    Bp = num_blocks * tb
    if Bp != B:
        pad = Bp - B
        lstm_output = jnp.pad(lstm_output, ((0, pad), (0, 0), (0, 0)))
        inp = jnp.pad(inp, ((0, pad), (0, 0)), constant_values=PAD_ID)

    ids = inp.astype(jnp.int32)
    w1t = w1.T  # transpose once at trace time, not per grid step

    out = pl.pallas_call(
        self_attentive_kernel,
        out_shape=jax.ShapeDtypeStruct((Bp, H), jnp.float32),
        grid_spec=pl.GridSpec(
            grid=(num_blocks,),
            in_specs=[
                pl.BlockSpec((tb, L), lambda b: (b, 0)),        # token ids
                pl.BlockSpec((tb, L, H), lambda b: (b, 0, 0)),  # lstm outputs
                pl.BlockSpec((H, H), lambda b: (0, 0)),         # ws1 weight (T)
                pl.BlockSpec((1, H), lambda b: (0, 0)),         # ws2 weight
            ],
            out_specs=pl.BlockSpec((tb, H), lambda b: (b, 0)),  # lane-dense 2-D
        ),
        compiler_params=pltpu.CompilerParams(dimension_semantics=("parallel",)),
    )(ids, lstm_output, w1t, w2)

    return out[:B].reshape(shape[0], shape[1], H)


def reference_encoder(inp, lstm_output, shape, w1, w2):
    """Pure-JAX transcription of the PyTorch forward, for validation."""
    B, L, H = lstm_output.shape
    hbar = jnp.tanh(lstm_output.reshape(-1, H) @ w1.T)                    # (B*L, H)
    alphas = (hbar @ w2.T).reshape(B, L, 1).transpose(0, 2, 1)            # (B, 1, L)
    penalized = alphas + -10000.0 * (inp.reshape(B, 1, L) == PAD_ID).astype(jnp.float32)
    a = jax.nn.softmax(penalized.reshape(-1, L), axis=1).reshape(B, 1, L)
    out = jnp.einsum("bij,bjh->bih", a, lstm_output)                      # (B, 1, H)
    return out.reshape(shape[0], shape[1], H)


if __name__ == "__main__":
    # Small shapes implied by the forward: B = shape0 * shape1 sequences of
    # length L, each with hidden size H.
    shape = (2, 4)
    B = shape[0] * shape[1]   # 8
    L = 8
    H = HIDDEN_SIZE           # 32

    key = jax.random.PRNGKey(0)
    k_lstm, k_inp, k_w1, k_w2 = jax.random.split(key, 4)

    lstm_output = jax.random.normal(k_lstm, (B, L, H), dtype=jnp.float32)
    # token ids in [0, 5); PAD_ID == 0 appears naturally -> exercises the mask
    inp = jax.random.randint(k_inp, (B, L), 0, 5, dtype=jnp.int32)

    # Deterministic parameter init (same shapes as nn.Linear(H, H) / nn.Linear(H, 1))
    w1 = jax.random.normal(k_w1, (H, H), dtype=jnp.float32) * 0.1   # ws1.weight
    w2 = jax.random.normal(k_w2, (1, H), dtype=jnp.float32) * 0.1   # ws2.weight

    out = self_attentive_encoder(inp, lstm_output, shape, w1, w2)
    out = jax.block_until_ready(out)

    ref = reference_encoder(inp, lstm_output, shape, w1, w2)
    assert out.shape == (shape[0], shape[1], H)
    assert jnp.allclose(out, ref, atol=1e-5, rtol=1e-5)

    print("KERNEL_OK")
</pallas_src>

<mosaic_0001>
module attributes {stable_mosaic.version = 11 : i64} {
  func.func @self_attentive_kernel(%arg0: i32, %arg1: memref<8x8xi32, #tpu.memory_space<vmem>>, %arg2: memref<8x8x32xf32, #tpu.memory_space<vmem>>, %arg3: memref<32x32xf32, #tpu.memory_space<vmem>>, %arg4: memref<1x32xf32, #tpu.memory_space<vmem>>, %arg5: memref<8x32xf32, #tpu.memory_space<vmem>>) attributes {dimension_semantics = [#tpu.dimension_semantics<parallel>], iteration_bounds = array<i64: 1>, scalar_prefetch = 0 : i64, scratch_operands = 0 : i64, tpu.core_type = #tpu.core_type<tc>, window_params = [{transform_indices = @transform_0, window_bounds = array<i64: 8, 8>}, {transform_indices = @transform_1, window_bounds = array<i64: 8, 8, 32>}, {pipeline_mode = #tpu.pipeline_mode<synchronous>, transform_indices = @transform_2, window_bounds = array<i64: 32, 32>}, {pipeline_mode = #tpu.pipeline_mode<synchronous>, transform_indices = @transform_3, window_bounds = array<i64: 1, 32>}, {transform_indices = @transform_4, window_bounds = array<i64: 8, 32>}]} {
    %c0 = arith.constant 0 : index
    %c0_0 = arith.constant 0 : index
    %c0_1 = arith.constant 0 : index
    %0 = vector.load %arg2[%c0, %c0_0, %c0_1] : memref<8x8x32xf32, #tpu.memory_space<vmem>>, vector<8x8x32xf32>
    %1 = vector.shape_cast %0 : vector<8x8x32xf32> to vector<64x32xf32>
    %c0_2 = arith.constant 0 : index
    %c0_3 = arith.constant 0 : index
    %2 = vector.load %arg3[%c0_2, %c0_3] : memref<32x32xf32, #tpu.memory_space<vmem>>, vector<32x32xf32>
    %cst = arith.constant dense<0.000000e+00> : vector<64x32xf32>
    %3 = tpu.matmul %1, %2, %cst {dimension_numbers = #tpu.dot_dimension_numbers<[1], [0], [0], [1], [0, 0, 1, 1], [], []>} : vector<64x32xf32>, vector<32x32xf32>, vector<64x32xf32> -> vector<64x32xf32>
    %4 = math.tanh %3 : vector<64x32xf32>
    %5 = vector.shape_cast %4 : vector<64x32xf32> to vector<8x8x32xf32>
    %c0_4 = arith.constant 0 : index
    %c0_5 = arith.constant 0 : index
    %6 = vector.load %arg4[%c0_4, %c0_5] : memref<1x32xf32, #tpu.memory_space<vmem>>, vector<1x32xf32>
    %7 = vector.shape_cast %6 : vector<1x32xf32> to vector<1x1x32xf32>
    %8 = vector.broadcast %7 : vector<1x1x32xf32> to vector<8x8x32xf32>
    %9 = arith.mulf %5, %8 : vector<8x8x32xf32>
    %cst_6 = arith.constant dense<0.000000e+00> : vector<8x8xf32>
    %10 = vector.multi_reduction <add>, %9, %cst_6 [2] : vector<8x8x32xf32> to vector<8x8xf32>
    %c0_7 = arith.constant 0 : index
    %c0_8 = arith.constant 0 : index
    %11 = vector.load %arg1[%c0_7, %c0_8] : memref<8x8xi32, #tpu.memory_space<vmem>>, vector<8x8xi32>
    %c0_i32 = arith.constant 0 : i32
    %12 = vector.broadcast %c0_i32 : i32 to vector<8x8xi32>
    %13 = arith.cmpi eq, %11, %12 : vector<8x8xi32>
    %cst_9 = arith.constant -1.000000e+04 : f32
    %cst_10 = arith.constant 0.000000e+00 : f32
    %14 = vector.broadcast %cst_9 : f32 to vector<8x8xf32>
    %15 = vector.broadcast %cst_10 : f32 to vector<8x8xf32>
    %16 = arith.select %13, %14, %15 : vector<8x8xi1>, vector<8x8xf32>
    %17 = arith.addf %10, %16 : vector<8x8xf32>
    %cst_11 = arith.constant dense<0xFF800000> : vector<8xf32>
    %18 = vector.multi_reduction <maximumf>, %17, %cst_11 [1] : vector<8x8xf32> to vector<8xf32>
    %19 = vector.shape_cast %18 : vector<8xf32> to vector<8x1xf32>
    %20 = vector.broadcast %19 : vector<8x1xf32> to vector<8x8xf32>
    %21 = arith.subf %17, %20 : vector<8x8xf32>
    %22 = math.exp %21 : vector<8x8xf32>
    %cst_12 = arith.constant dense<0.000000e+00> : vector<8xf32>
    %23 = vector.multi_reduction <add>, %22, %cst_12 [1] : vector<8x8xf32> to vector<8xf32>
    %24 = vector.shape_cast %23 : vector<8xf32> to vector<8x1xf32>
    %25 = vector.broadcast %24 : vector<8x1xf32> to vector<8x8xf32>
    %26 = arith.divf %22, %25 : vector<8x8xf32>
    %27 = vector.shape_cast %26 : vector<8x8xf32> to vector<8x8x1xf32>
    %28 = vector.broadcast %27 : vector<8x8x1xf32> to vector<8x8x32xf32>
    %29 = arith.mulf %28, %0 : vector<8x8x32xf32>
    %cst_13 = arith.constant dense<0.000000e+00> : vector<8x32xf32>
    %30 = vector.multi_reduction <add>, %29, %cst_13 [1] : vector<8x8x32xf32> to vector<8x32xf32>
    %c0_14 = arith.constant 0 : index
    %c0_15 = arith.constant 0 : index
    %31 = vector.load %arg5[%c0_14, %c0_15] : memref<8x32xf32, #tpu.memory_space<vmem>>, vector<8x32xf32>
    tpu.vector_store %arg5[%c0_14, %c0_15], %30 {strides = array<i32>} : memref<8x32xf32, #tpu.memory_space<vmem>>, vector<8x32xf32>,
    return
  }
  func.func @transform_0(%arg0: i32) -> (i32, i32) {
    %c0_i32 = arith.constant 0 : i32
    %c0_i32_0 = arith.constant 0 : i32
    return %arg0, %c0_i32 : i32, i32
  }
  func.func @transform_1(%arg0: i32) -> (i32, i32, i32) {
    %c0_i32 = arith.constant 0 : i32
    %c0_i32_0 = arith.constant 0 : i32
    %c0_i32_1 = arith.constant 0 : i32
    return %arg0, %c0_i32, %c0_i32_0 : i32, i32, i32
  }
  func.func @transform_2(%arg0: i32) -> (i32, i32) {
    %c0_i32 = arith.constant 0 : i32
    %c0_i32_0 = arith.constant 0 : i32
    %c0_i32_1 = arith.constant 0 : i32
    return %c0_i32, %c0_i32_0 : i32, i32
  }
  func.func @transform_3(%arg0: i32) -> (i32, i32) {
    %c0_i32 = arith.constant 0 : i32
    %c0_i32_0 = arith.constant 0 : i32
    %c0_i32_1 = arith.constant 0 : i32
    return %c0_i32, %c0_i32_0 : i32, i32
  }
  func.func @transform_4(%arg0: i32) -> (i32, i32) {
    %c0_i32 = arith.constant 0 : i32
    %c0_i32_0 = arith.constant 0 : i32
    return %arg0, %c0_i32 : i32, i32
  }
}

</mosaic_0001>

<llo_original>
// kernel: tpu_custom_call.1
$region0: #{tpu_custom_call.1}
  #allocation0 [shape = 'u32[]', space=smem, size = 0x4, offset = 0x4, fixed_abs, tag = 'smem constant byte address 0x4 - core index']
  #allocation1 [shape = 'u32[144,128]{1,0:T(1,128)}', space=vmem, size = 0x12000, scoped, tag = 'internal scratch']
  %s0 = inlined_call_operand.hbm [shape: s32[8,8], index: 0, kind: input, shape index: {}]
  %s1 = inlined_call_operand.hbm [shape: f32[8,8,32], index: 1, kind: input, shape index: {}]
  %s2 = inlined_call_operand.hbm [shape: f32[32,32], index: 2, kind: input, shape index: {}]
  %s3 = inlined_call_operand.vmem [shape: f32[1,32], index: 3, kind: input, shape index: {}]
  %s4 = inlined_call_operand.hbm [shape: f32[8,32], index: 4, kind: output, shape index: {}]
  %s5 = sld [smem:[#allocation0]]
  $region38: #{tpu_custom_call.1} parent=0
    _
  %s7 = ssub.s32 1, %s5
  %s8 = scalar_select 0, %s7, %s5
  $region1: #{tpu_custom_call.1} parent=0
    #allocation2 [shape = 'u8[4096]{0}', space=vmem, size = 0x1000, scoped, tag = 'input window, operand 0, single buffered']
    #allocation3 [shape = 's32[1]{0}', space=sflag, size = 0x4, scoped, tag = 'scoped memory for tpu_custom_call.1']
    #allocation4 [shape = 's32[1]{0}', space=sflag, size = 0x4, scoped, tag = 'scoped memory for tpu_custom_call.1']
    #allocation5 [shape = 'u8[32768]{0}', space=vmem, size = 0x8000, scoped, tag = 'input window, operand 1, single buffered']
    #allocation6 [shape = 's32[1]{0}', space=sflag, size = 0x4, scoped, tag = 'scoped memory for tpu_custom_call.1']
    #allocation7 [shape = 'u8[16384]{0}', space=vmem, size = 0x4000, scoped, tag = 'input window, operand 2, single buffered']
    #allocation8 [shape = 'u8[4096]{0}', space=vmem, size = 0x1000, scoped, tag = 'output window, operand 0, single buffered']
    %9 = vsyncpa [#allocation3], 0
    %10 = vsyncpa [#allocation6], 0
    %11 = vsyncpa [#allocation4], 0
    // Predicated region
    $region2: #{tpu_custom_call.1} parent=1 // pred_check
      _
    $region3: #{tpu_custom_call.1} parent=1 // pred_check_branch
      %13 = sbr.rel (0) target = $region5
    $region4: #{tpu_custom_call.1} parent=1 // pred_region
      %s15 = ssub.s32 128, 128
      %16 = vsyncadd [#allocation3], %s15
      %s18 = sshll.u32 [#allocation2], 4
      %s19 = int_to_ptr.vmem [resolvable:$true] %s18
      %21 = dma.hbm_to_vmem [thread:$0]  %s0, 128, %s19, [#allocation3]
    $region5: #{tpu_custom_call.1} parent=1 // pred_fallthru
      _
    // Predicated region
    $region6: #{tpu_custom_call.1} parent=1 // pred_check
      _
    $region7: #{tpu_custom_call.1} parent=1 // pred_check_branch
      %23 = sbr.rel (0) target = $region9
    $region8: #{tpu_custom_call.1} parent=1 // pred_region
      %s25 = ssub.s32 1024, 1024
      %26 = vsyncadd [#allocation6], %s25
      %s27 = sshll.u32 [#allocation5], 4
      %s28 = int_to_ptr.vmem [resolvable:$true] %s27
      %33 = dma.hbm_to_vmem [thread:$0]  %s1, 1024, %s28, [#allocation6], 128, 128, 8
    $region9: #{tpu_custom_call.1} parent=1 // pred_fallthru
      _
    // Predicated region
    $region10: #{tpu_custom_call.1} parent=1 // pred_check
      _
    $region11: #{tpu_custom_call.1} parent=1 // pred_check_branch
      %35 = sbr.rel (0) target = $region13
    $region12: #{tpu_custom_call.1} parent=1 // pred_region
      %s37 = ssub.s32 512, 512
      %38 = vsyncadd [#allocation6], %s37
      %s39 = sshll.u32 [#allocation7], 4
      %s40 = int_to_ptr.vmem [resolvable:$true] %s39
      %45 = dma.hbm_to_vmem [thread:$0]  %s2, 512, %s40, [#allocation6], 128, 128, 8
    $region13: #{tpu_custom_call.1} parent=1 // pred_fallthru
      _
    // Predicated region
    $region14: #{tpu_custom_call.1} parent=1 // pred_check
      _
    $region15: #{tpu_custom_call.1} parent=1 // pred_check_branch
      %47 = sbr.rel (0) target = $region17
    $region16: #{tpu_custom_call.1} parent=1 // pred_region
      _
    $region17: #{tpu_custom_call.1} parent=1 // pred_fallthru
      _
    // Predicated region
    $region18: #{tpu_custom_call.1} parent=1 // pred_check
      _
    $region19: #{tpu_custom_call.1} parent=1 // pred_check_branch
      %49 = sbr.rel (0) target = $region21
    $region20: #{tpu_custom_call.1} parent=1 // pred_region
      %50 = dma.done [#allocation3], 128
    $region21: #{tpu_custom_call.1} parent=1 // pred_fallthru
      _
    // Predicated region
    $region22: #{tpu_custom_call.1} parent=1 // pred_check
      _
    $region23: #{tpu_custom_call.1} parent=1 // pred_check_branch
      %52 = sbr.rel (0) target = $region25
    $region24: #{tpu_custom_call.1} parent=1 // pred_region
      %53 = dma.done [#allocation6], 1024
    $region25: #{tpu_custom_call.1} parent=1 // pred_fallthru
      _
    // Predicated region
    $region26: #{tpu_custom_call.1} parent=1 // pred_check
      _
    $region27: #{tpu_custom_call.1} parent=1 // pred_check_branch
      %55 = sbr.rel (0) target = $region29
    $region28: #{tpu_custom_call.1} parent=1 // pred_region
      %56 = dma.done [#allocation6], 512
    $region29: #{tpu_custom_call.1} parent=1 // pred_fallthru
      _
    %v57 = vld [vmem:[#allocation5] sm:$0xff]
    %v58 = vld [vmem:[#allocation5 + $0x8] sm:$0xff]
    %v59 = vld [vmem:[#allocation5 + $0x10] sm:$0xff]
    %v60 = vld [vmem:[#allocation5 + $0x18] sm:$0xff]
    %v61 = vld [vmem:[#allocation5 + $0x20] sm:$0xff]
    %v62 = vld [vmem:[#allocation5 + $0x28] sm:$0xff]
    %v63 = vld [vmem:[#allocation5 + $0x30] sm:$0xff]
    %v64 = vld [vmem:[#allocation5 + $0x38] sm:$0xff]
    %v65 = vld [vmem:[#allocation7] sm:$0xff]
    %v66 = vld [vmem:[#allocation7 + $0x8] sm:$0xff]
    %v67 = vld [vmem:[#allocation7 + $0x10] sm:$0xff]
    %v68 = vld [vmem:[#allocation7 + $0x18] sm:$0xff]
    %vm69 = vcmask 261120
    %v71 = vsel %vm69, %v57, 0
    %v74 = vsel %vm69, %v58, 0
    %v77 = vsel %vm69, %v59, 0
    %v80 = vsel %vm69, %v60, 0
    %v83 = vsel %vm69, %v61, 0
    %v86 = vsel %vm69, %v62, 0
    %v89 = vsel %vm69, %v63, 0
    %v92 = vsel %vm69, %v64, 0
    %94 = vmatprep.subr.mxu0 0.0
    %95 = vmatpush1.msra.mxu0 %v65
    %96 = vmatprep.subr.mxu0 0.0
    %97 = vmatpush1.msra.mxu0 %v66
    %98 = vmatprep.subr.mxu0 0.0
    %99 = vmatpush1.msra.mxu0 %v67
    %100 = vmatprep.subr.mxu0 0.0
    %101 = vmatpush1.msra.mxu0 %v68
    %102 = vmatprep.subr.mxu0 0.0
    %103 = vmatpush1.msra.mxu0 0.0
    %104 = vmatprep.subr.mxu0 0.0
    %105 = vmatpush1.msra.mxu0 0.0
    %106 = vmatprep.subr.mxu0 0.0
    %107 = vmatpush1.msra.mxu0 0.0
    %108 = vmatprep.subr.mxu0 0.0
    %109 = vmatpush1.msra.mxu0 0.0
    %110 = vmatprep.subr.mxu0 0.0
    %111 = vmatpush1.msra.mxu0 0.0
    %112 = vmatprep.subr.mxu0 0.0
    %113 = vmatpush1.msra.mxu0 0.0
    %114 = vmatprep.subr.mxu0 0.0
    %115 = vmatpush1.msra.mxu0 0.0
    %116 = vmatprep.subr.mxu0 0.0
    %117 = vmatpush1.msra.mxu0 0.0
    %118 = vmatprep.subr.mxu0 0.0
    %119 = vmatpush1.msra.mxu0 0.0
    %120 = vmatprep.subr.mxu0 0.0
    %121 = vmatpush1.msra.mxu0 0.0
    %122 = vmatprep.subr.mxu0 0.0
    %123 = vmatpush1.msra.mxu0 0.0
    %124 = vmatprep.subr.mxu0 0.0
    %125 = vmatpush1.msra.mxu0 0.0
    %126 = vmatprep.subr.mxu0 0.0
    %127 = vmatpush1.msra.mxu0 0.0
    %128 = vmatprep.subr.mxu0 0.0
    %129 = vmatpush1.msra.mxu0 0.0
    %130 = vmatprep.subr.mxu0 0.0
    %131 = vmatpush1.msra.mxu0 0.0
    %132 = vmatprep.subr.mxu0 0.0
    %133 = vmatpush1.msra.mxu0 0.0
    %134 = vmatprep.subr.mxu0 0.0
    %135 = vmatpush1.msra.mxu0 0.0
    %136 = vmatprep.subr.mxu0 0.0
    %137 = vmatpush1.msra.mxu0 0.0
    %138 = vmatprep.subr.mxu0 0.0
    %139 = vmatpush1.msra.mxu0 0.0
    %140 = vmatprep.subr.mxu0 0.0
    %141 = vmatpush1.msra.mxu0 0.0
    %142 = vmatprep.subr.mxu0 0.0
    %143 = vmatpush1.msra.mxu0 0.0
    %144 = vmatprep.subr.mxu0 0.0
    %145 = vmatpush1.msra.mxu0 0.0
    %146 = vmatprep.subr.mxu0 0.0
    %147 = vmatpush1.msra.mxu0 0.0
    %148 = vmatprep.subr.mxu0 0.0
    %149 = vmatpush1.msra.mxu0 0.0
    %150 = vmatprep.subr.mxu0 0.0
    %151 = vmatpush1.msra.mxu0 0.0
    %152 = vmatprep.subr.mxu0 0.0
    %153 = vmatpush1.msra.mxu0 0.0
    %154 = vmatprep.subr.mxu0 0.0
    %155 = vmatpush1.msra.mxu0 0.0
    %156 = vmatprep.subr.mxu0 0.0
    %157 = vmatpush1.msra.mxu0 0.0
    %158 = vmatprep.mubr.f32.mxu0 0.0
    %159 = vmatmul.mubr.f32.gmra.mrb[0].mxu0 %v71
    %v160 = vpop.f32.mrb[0].mxu0
    %v161 = vadd.f32 0.0, %v160
    %v162 = vpop.f32.mrb[0].mxu0
    %163 = vmatprep.mubr.f32.mxu0 0.0
    %164 = vmatmul.mubr.f32.gmra.mrb[0].mxu0 %v74
    %v165 = vpop.f32.mrb[0].mxu0
    %v166 = vadd.f32 0.0, %v165
    %v167 = vpop.f32.mrb[0].mxu0
    %168 = vmatprep.mubr.f32.mxu0 0.0
    %169 = vmatmul.mubr.f32.gmra.mrb[0].mxu0 %v77
    %v170 = vpop.f32.mrb[0].mxu0
    %v171 = vadd.f32 0.0, %v170
    %v172 = vpop.f32.mrb[0].mxu0
    %173 = vmatprep.mubr.f32.mxu0 0.0
    %174 = vmatmul.mubr.f32.gmra.mrb[0].mxu0 %v80
    %v175 = vpop.f32.mrb[0].mxu0
    %v176 = vadd.f32 0.0, %v175
    %v177 = vpop.f32.mrb[0].mxu0
    %178 = vmatprep.mubr.f32.mxu0 0.0
    %179 = vmatmul.mubr.f32.gmra.mrb[0].mxu0 %v83
    %v180 = vpop.f32.mrb[0].mxu0
    %v181 = vadd.f32 0.0, %v180
    %v182 = vpop.f32.mrb[0].mxu0
    %183 = vmatprep.mubr.f32.mxu0 0.0
    %184 = vmatmul.mubr.f32.gmra.mrb[0].mxu0 %v86
    %v185 = vpop.f32.mrb[0].mxu0
    %v186 = vadd.f32 0.0, %v185
    %v187 = vpop.f32.mrb[0].mxu0
    %188 = vmatprep.mubr.f32.mxu0 0.0
    %189 = vmatmul.mubr.f32.gmra.mrb[0].mxu0 %v89
    %v190 = vpop.f32.mrb[0].mxu0
    %v191 = vadd.f32 0.0, %v190
    %v192 = vpop.f32.mrb[0].mxu0
    %193 = vmatprep.mubr.f32.mxu0 0.0
    %194 = vmatmul.mubr.f32.gmra.mrb[0].mxu0 %v92
    %v195 = vpop.f32.mrb[0].mxu0
    %v196 = vadd.f32 0.0, %v195
    %v197 = vpop.f32.mrb[0].mxu0
    %198 = vdwg.mxu0
    %v199 = vtanh.pop %v161
    %v200 = vtanh.pop %v166
    %v201 = vtanh.pop %v171
    %v202 = vtanh.pop %v176
    %v203 = vtanh.pop %v181
    %v204 = vtanh.pop %v186
    %v205 = vtanh.pop %v191
    %v206 = vtanh.pop %v196
    %v207 = vld [vmem:[%s3] sm:$0x1]
    %v209 = vlaneseq
    %v210 = vshrl.u32 %v209, 7
    %v211 = vsub.s32 0, %v210
    %v212 = vrot.slane %v207, %v211
    %v214 = vmul.f32 %v199, %v212
    %v215 = vmul.f32 %v200, %v212
    %v216 = vmul.f32 %v201, %v212
    %v217 = vmul.f32 %v202, %v212
    %v218 = vmul.f32 %v203, %v212
    %v219 = vmul.f32 %v204, %v212
    %v220 = vmul.f32 %v205, %v212
    %v221 = vmul.f32 %v206, %v212
    %v222 = vsel %vm69, %v214, 0.0
    %223 = vadd.xlane.f32.xlu0 %v222
    %v224 = vpop.xlane.xlu0 %223
    %v225 = vsel %vm69, %v215, 0.0
    %226 = vadd.xlane.f32.xlu0 %v225
    %v227 = vpop.xlane.xlu0 %226
    %v228 = vsel %vm69, %v216, 0.0
    %229 = vadd.xlane.f32.xlu0 %v228
    %v230 = vpop.xlane.xlu0 %229
    %v231 = vsel %vm69, %v217, 0.0
    %232 = vadd.xlane.f32.xlu0 %v231
    %v233 = vpop.xlane.xlu0 %232
    %v234 = vsel %vm69, %v218, 0.0
    %235 = vadd.xlane.f32.xlu0 %v234
    %v236 = vpop.xlane.xlu0 %235
    %v237 = vsel %vm69, %v219, 0.0
    %238 = vadd.xlane.f32.xlu0 %v237
    %v239 = vpop.xlane.xlu0 %238
    %v240 = vsel %vm69, %v220, 0.0
    %241 = vadd.xlane.f32.xlu0 %v240
    %v242 = vpop.xlane.xlu0 %241
    %v243 = vsel %vm69, %v221, 0.0
    %244 = vadd.xlane.f32.xlu0 %v243
    %v245 = vpop.xlane.xlu0 %244
    %v246 = vld [vmem:[#allocation2] sm:$0xff]
    %vm247 = vcmp.eq.s32.totalorder %v246, 0
    %v248 = vsel %vm247, -10000.0, 0.0
    %v250 = vlaneseq
    %v251 = vshrl.u32 %v250, 7
    %v252 = vsub.s32 0, %v251
    %v253 = vrot.slane %v248, %v252
    %255 = vbcast.lane.b32.xlu0 %v253, 256
    %v256 = vpop.permute.xlu0 %255
    %v257 = vlaneseq
    %v258 = vshrl.u32 %v257, 7
    %v259 = vsub.s32 1, %v258
    %v260 = vrot.slane %v248, %v259
    %262 = vbcast.lane.b32.xlu0 %v260, 256
    %v263 = vpop.permute.xlu0 %262
    %v264 = vlaneseq
    %v265 = vshrl.u32 %v264, 7
    %v266 = vsub.s32 2, %v265
    %v267 = vrot.slane %v248, %v266
    %269 = vbcast.lane.b32.xlu0 %v267, 256
    %v270 = vpop.permute.xlu0 %269
    %v271 = vlaneseq
    %v272 = vshrl.u32 %v271, 7
    %v273 = vsub.s32 3, %v272
    %v274 = vrot.slane %v248, %v273
    %276 = vbcast.lane.b32.xlu0 %v274, 256
    %v277 = vpop.permute.xlu0 %276
    %v278 = vlaneseq
    %v279 = vshrl.u32 %v278, 7
    %v280 = vsub.s32 4, %v279
    %v281 = vrot.slane %v248, %v280
    %283 = vbcast.lane.b32.xlu0 %v281, 256
    %v284 = vpop.permute.xlu0 %283
    %v285 = vlaneseq
    %v286 = vshrl.u32 %v285, 7
    %v287 = vsub.s32 5, %v286
    %v288 = vrot.slane %v248, %v287
    %290 = vbcast.lane.b32.xlu0 %v288, 256
    %v291 = vpop.permute.xlu0 %290
    %v292 = vlaneseq
    %v293 = vshrl.u32 %v292, 7
    %v294 = vsub.s32 6, %v293
    %v295 = vrot.slane %v248, %v294
    %297 = vbcast.lane.b32.xlu0 %v295, 256
    %v298 = vpop.permute.xlu0 %297
    %v299 = vlaneseq
    %v300 = vshrl.u32 %v299, 7
    %v301 = vsub.s32 7, %v300
    %v302 = vrot.slane %v248, %v301
    %304 = vbcast.lane.b32.xlu0 %v302, 256
    %v305 = vpop.permute.xlu0 %304
    %v314 = vadd.f32 %v224, %v256
    %v315 = vadd.f32 %v227, %v263
    %v316 = vadd.f32 %v230, %v270
    %v317 = vadd.f32 %v233, %v277
    %v318 = vadd.f32 %v236, %v284
    %v319 = vadd.f32 %v239, %v291
    %v320 = vadd.f32 %v242, %v298
    %v321 = vadd.f32 %v245, %v305
    %330 = vset.pattern.permute.xlu0 0
    %331 = vperm.xlu0 %330, %v314
    %v332 = vpop.permute.xlu0 %331
    %333 = vset.pattern.permute.xlu0 0
    %334 = vperm.xlu0 %333, %v315
    %v335 = vpop.permute.xlu0 %334
    %336 = vset.pattern.permute.xlu0 0
    %337 = vperm.xlu0 %336, %v316
    %v338 = vpop.permute.xlu0 %337
    %339 = vset.pattern.permute.xlu0 0
    %340 = vperm.xlu0 %339, %v317
    %v341 = vpop.permute.xlu0 %340
    %342 = vset.pattern.permute.xlu0 0
    %343 = vperm.xlu0 %342, %v318
    %v344 = vpop.permute.xlu0 %343
    %345 = vset.pattern.permute.xlu0 0
    %346 = vperm.xlu0 %345, %v319
    %v347 = vpop.permute.xlu0 %346
    %348 = vset.pattern.permute.xlu0 0
    %349 = vperm.xlu0 %348, %v320
    %v350 = vpop.permute.xlu0 %349
    %351 = vset.pattern.permute.xlu0 0
    %352 = vperm.xlu0 %351, %v321
    %v353 = vpop.permute.xlu0 %352
    %v354 = vlaneseq
    %v355 = vand.u32 %v354, 127
    %v356 = vlaneseq
    %v357 = vshrl.u32 %v356, 7
    %v358 = vsub.s32 %v355, %v357
    %v359 = vrot.slane %v332, %v358
    %v360 = vlaneseq
    %v361 = vshrl.u32 %v360, 7
    %v362 = vsub.s32 %v355, %v361
    %v363 = vrot.slane %v335, %v362
    %v364 = vlaneseq
    %v365 = vshrl.u32 %v364, 7
    %v366 = vsub.s32 %v355, %v365
    %v367 = vrot.slane %v338, %v366
    %v368 = vlaneseq
    %v369 = vshrl.u32 %v368, 7
    %v370 = vsub.s32 %v355, %v369
    %v371 = vrot.slane %v341, %v370
    %v372 = vlaneseq
    %v373 = vshrl.u32 %v372, 7
    %v374 = vsub.s32 %v355, %v373
    %v375 = vrot.slane %v344, %v374
    %v376 = vlaneseq
    %v377 = vshrl.u32 %v376, 7
    %v378 = vsub.s32 %v355, %v377
    %v379 = vrot.slane %v347, %v378
    %v380 = vlaneseq
    %v381 = vshrl.u32 %v380, 7
    %v382 = vsub.s32 %v355, %v381
    %v383 = vrot.slane %v350, %v382
    %v384 = vlaneseq
    %v385 = vshrl.u32 %v384, 7
    %v386 = vsub.s32 %v355, %v385
    %v387 = vrot.slane %v353, %v386
    %vm388 = vcmask 1041409
    %v389 = vsel %vm388, %v363, %v359
    %vm390 = vcmask 1042434
    %v391 = vsel %vm390, %v367, %v389
    %vm392 = vcmask 1043459
    %v393 = vsel %vm392, %v371, %v391
    %vm394 = vcmask 1044484
    %v395 = vsel %vm394, %v375, %v393
    %vm396 = vcmask 1045509
    %v397 = vsel %vm396, %v379, %v395
    %vm398 = vcmask 1046534
    %v399 = vsel %vm398, %v383, %v397
    %vm400 = vcmask 1047559
    %v401 = vsel %vm400, %v387, %v399
    %vm403 = vcmask 64512
    %v404 = vsel %vm403, %v401, -inf
    %405 = vmax.xlane.f32.xlu0 %v404
    %v406 = vpop.xlane.xlu0 %405
    %v408 = vlaneseq
    %v409 = vshrl.u32 %v408, 7
    %v410 = vsub.s32 0, %v409
    %v411 = vrot.slane %v406, %v410
    %v412 = vlaneseq
    %v413 = vshrl.u32 %v412, 7
    %v414 = vsub.s32 1, %v413
    %v415 = vrot.slane %v406, %v414
    %v416 = vlaneseq
    %v417 = vshrl.u32 %v416, 7
    %v418 = vsub.s32 2, %v417
    %v419 = vrot.slane %v406, %v418
    %v420 = vlaneseq
    %v421 = vshrl.u32 %v420, 7
    %v422 = vsub.s32 3, %v421
    %v423 = vrot.slane %v406, %v422
    %v424 = vlaneseq
    %v425 = vshrl.u32 %v424, 7
    %v426 = vsub.s32 4, %v425
    %v427 = vrot.slane %v406, %v426
    %v428 = vlaneseq
    %v429 = vshrl.u32 %v428, 7
    %v430 = vsub.s32 5, %v429
    %v431 = vrot.slane %v406, %v430
    %v432 = vlaneseq
    %v433 = vshrl.u32 %v432, 7
    %v434 = vsub.s32 6, %v433
    %v435 = vrot.slane %v406, %v434
    %v436 = vlaneseq
    %v437 = vshrl.u32 %v436, 7
    %v438 = vsub.s32 7, %v437
    %v439 = vrot.slane %v406, %v438
    %v448 = vsub.f32 %v314, %v411
    %v449 = vsub.f32 %v315, %v415
    %v450 = vsub.f32 %v316, %v419
    %v451 = vsub.f32 %v317, %v423
    %v452 = vsub.f32 %v318, %v427
    %v453 = vsub.f32 %v319, %v431
    %v454 = vsub.f32 %v320, %v435
    %v455 = vsub.f32 %v321, %v439
    %v456 = vmul.f32 %v448, 1.442695
    %v457 = vpow.pop %v456
    %v458 = vmul.f32 %v449, 1.442695
    %v459 = vpow.pop %v458
    %v460 = vmul.f32 %v450, 1.442695
    %v461 = vpow.pop %v460
    %v462 = vmul.f32 %v451, 1.442695
    %v463 = vpow.pop %v462
    %v464 = vmul.f32 %v452, 1.442695
    %v465 = vpow.pop %v464
    %v466 = vmul.f32 %v453, 1.442695
    %v467 = vpow.pop %v466
    %v468 = vmul.f32 %v454, 1.442695
    %v469 = vpow.pop %v468
    %v470 = vmul.f32 %v455, 1.442695
    %v471 = vpow.pop %v470
    %480 = vset.pattern.permute.xlu0 0
    %481 = vperm.xlu0 %480, %v457
    %v482 = vpop.permute.xlu0 %481
    %483 = vset.pattern.permute.xlu0 0
    %484 = vperm.xlu0 %483, %v459
    %v485 = vpop.permute.xlu0 %484
    %486 = vset.pattern.permute.xlu0 0
    %487 = vperm.xlu0 %486, %v461
    %v488 = vpop.permute.xlu0 %487
    %489 = vset.pattern.permute.xlu0 0
    %490 = vperm.xlu0 %489, %v463
    %v491 = vpop.permute.xlu0 %490
    %492 = vset.pattern.permute.xlu0 0
    %493 = vperm.xlu0 %492, %v465
    %v494 = vpop.permute.xlu0 %493
    %495 = vset.pattern.permute.xlu0 0
    %496 = vperm.xlu0 %495, %v467
    %v497 = vpop.permute.xlu0 %496
    %498 = vset.pattern.permute.xlu0 0
    %499 = vperm.xlu0 %498, %v469
    %v500 = vpop.permute.xlu0 %499
    %501 = vset.pattern.permute.xlu0 0
    %502 = vperm.xlu0 %501, %v471
    %v503 = vpop.permute.xlu0 %502
    %v504 = vlaneseq
    %v505 = vshrl.u32 %v504, 7
    %v506 = vsub.s32 %v355, %v505
    %v507 = vrot.slane %v482, %v506
    %v508 = vlaneseq
    %v509 = vshrl.u32 %v508, 7
    %v510 = vsub.s32 %v355, %v509
    %v511 = vrot.slane %v485, %v510
    %v512 = vlaneseq
    %v513 = vshrl.u32 %v512, 7
    %v514 = vsub.s32 %v355, %v513
    %v515 = vrot.slane %v488, %v514
    %v516 = vlaneseq
    %v517 = vshrl.u32 %v516, 7
    %v518 = vsub.s32 %v355, %v517
    %v519 = vrot.slane %v491, %v518
    %v520 = vlaneseq
    %v521 = vshrl.u32 %v520, 7
    %v522 = vsub.s32 %v355, %v521
    %v523 = vrot.slane %v494, %v522
    %v524 = vlaneseq
    %v525 = vshrl.u32 %v524, 7
    %v526 = vsub.s32 %v355, %v525
    %v527 = vrot.slane %v497, %v526
    %v528 = vlaneseq
    %v529 = vshrl.u32 %v528, 7
    %v530 = vsub.s32 %v355, %v529
    %v531 = vrot.slane %v500, %v530
    %v532 = vlaneseq
    %v533 = vshrl.u32 %v532, 7
    %v534 = vsub.s32 %v355, %v533
    %v535 = vrot.slane %v503, %v534
    %v536 = vsel %vm388, %v511, %v507
    %v537 = vsel %vm390, %v515, %v536
    %v538 = vsel %vm392, %v519, %v537
    %v539 = vsel %vm394, %v523, %v538
    %v540 = vsel %vm396, %v527, %v539
    %v541 = vsel %vm398, %v531, %v540
    %v542 = vsel %vm400, %v535, %v541
    %v544 = vsel %vm403, %v542, 0.0
    %545 = vadd.xlane.f32.xlu0 %v544
    %v546 = vpop.xlane.xlu0 %545
    %v548 = vlaneseq
    %v549 = vshrl.u32 %v548, 7
    %v550 = vsub.s32 0, %v549
    %v551 = vrot.slane %v546, %v550
    %v552 = vlaneseq
    %v553 = vshrl.u32 %v552, 7
    %v554 = vsub.s32 1, %v553
    %v555 = vrot.slane %v546, %v554
    %v556 = vlaneseq
    %v557 = vshrl.u32 %v556, 7
    %v558 = vsub.s32 2, %v557
    %v559 = vrot.slane %v546, %v558
    %v560 = vlaneseq
    %v561 = vshrl.u32 %v560, 7
    %v562 = vsub.s32 3, %v561
    %v563 = vrot.slane %v546, %v562
    %v564 = vlaneseq
    %v565 = vshrl.u32 %v564, 7
    %v566 = vsub.s32 4, %v565
    %v567 = vrot.slane %v546, %v566
    %v568 = vlaneseq
    %v569 = vshrl.u32 %v568, 7
    %v570 = vsub.s32 5, %v569
    %v571 = vrot.slane %v546, %v570
    %v572 = vlaneseq
    %v573 = vshrl.u32 %v572, 7
    %v574 = vsub.s32 6, %v573
    %v575 = vrot.slane %v546, %v574
    %v576 = vlaneseq
    %v577 = vshrl.u32 %v576, 7
    %v578 = vsub.s32 7, %v577
    %v579 = vrot.slane %v546, %v578
    %v588 = vrcp.pop %v551
    %v589 = vmul.f32 %v457, %v588
    %v590 = vrcp.pop %v555
    %v591 = vmul.f32 %v459, %v590
    %v592 = vrcp.pop %v559
    %v593 = vmul.f32 %v461, %v592
    %v594 = vrcp.pop %v563
    %v595 = vmul.f32 %v463, %v594
    %v596 = vrcp.pop %v567
    %v597 = vmul.f32 %v465, %v596
    %v598 = vrcp.pop %v571
    %v599 = vmul.f32 %v467, %v598
    %v600 = vrcp.pop %v575
    %v601 = vmul.f32 %v469, %v600
    %v602 = vrcp.pop %v579
    %v603 = vmul.f32 %v471, %v602
    %605 = vset.pattern.permute.xlu0 0
    %606 = vperm.xlu0 %605, %v589
    %v607 = vpop.permute.xlu0 %606
    %610 = vset.pattern.permute.xlu0 0
    %611 = vperm.xlu0 %610, %v591
    %v612 = vpop.permute.xlu0 %611
    %615 = vset.pattern.permute.xlu0 0
    %616 = vperm.xlu0 %615, %v593
    %v617 = vpop.permute.xlu0 %616
    %620 = vset.pattern.permute.xlu0 0
    %621 = vperm.xlu0 %620, %v595
    %v622 = vpop.permute.xlu0 %621
    %625 = vset.pattern.permute.xlu0 0
    %626 = vperm.xlu0 %625, %v597
    %v627 = vpop.permute.xlu0 %626
    %630 = vset.pattern.permute.xlu0 0
    %631 = vperm.xlu0 %630, %v599
    %v632 = vpop.permute.xlu0 %631
    %635 = vset.pattern.permute.xlu0 0
    %636 = vperm.xlu0 %635, %v601
    %v637 = vpop.permute.xlu0 %636
    %640 = vset.pattern.permute.xlu0 0
    %641 = vperm.xlu0 %640, %v603
    %v642 = vpop.permute.xlu0 %641
    %v644 = vmul.f32 %v607, %v57
    %v645 = vmul.f32 %v612, %v58
    %v646 = vmul.f32 %v617, %v59
    %v647 = vmul.f32 %v622, %v60
    %v648 = vmul.f32 %v627, %v61
    %v649 = vmul.f32 %v632, %v62
    %v650 = vmul.f32 %v637, %v63
    %v651 = vmul.f32 %v642, %v64
    %v652 = vsel %vm69, %v644, 0.0
    %v653 = vrot.slane %v652, 4
    %v654 = vadd.f32 %v652, %v653
    %v655 = vrot.slane %v654, 2
    %v656 = vadd.f32 %v654, %v655
    %v657 = vrot.slane %v656, 1
    %v658 = vadd.f32 %v656, %v657
    %v659 = vsel %vm69, %v645, 0.0
    %v660 = vrot.slane %v659, 4
    %v661 = vadd.f32 %v659, %v660
    %v662 = vrot.slane %v661, 2
    %v663 = vadd.f32 %v661, %v662
    %v664 = vrot.slane %v663, 1
    %v665 = vadd.f32 %v663, %v664
    %v666 = vsel %vm69, %v646, 0.0
    %v667 = vrot.slane %v666, 4
    %v668 = vadd.f32 %v666, %v667
    %v669 = vrot.slane %v668, 2
    %v670 = vadd.f32 %v668, %v669
    %v671 = vrot.slane %v670, 1
    %v672 = vadd.f32 %v670, %v671
    %v673 = vsel %vm69, %v647, 0.0
    %v674 = vrot.slane %v673, 4
    %v675 = vadd.f32 %v673, %v674
    %v676 = vrot.slane %v675, 2
    %v677 = vadd.f32 %v675, %v676
    %v678 = vrot.slane %v677, 1
    %v679 = vadd.f32 %v677, %v678
    %v680 = vsel %vm69, %v648, 0.0
    %v681 = vrot.slane %v680, 4
    %v682 = vadd.f32 %v680, %v681
    %v683 = vrot.slane %v682, 2
    %v684 = vadd.f32 %v682, %v683
    %v685 = vrot.slane %v684, 1
    %v686 = vadd.f32 %v684, %v685
    %v687 = vsel %vm69, %v649, 0.0
    %v688 = vrot.slane %v687, 4
    %v689 = vadd.f32 %v687, %v688
    %v690 = vrot.slane %v689, 2
    %v691 = vadd.f32 %v689, %v690
    %v692 = vrot.slane %v691, 1
    %v693 = vadd.f32 %v691, %v692
    %v694 = vsel %vm69, %v650, 0.0
    %v695 = vrot.slane %v694, 4
    %v696 = vadd.f32 %v694, %v695
    %v697 = vrot.slane %v696, 2
    %v698 = vadd.f32 %v696, %v697
    %v699 = vrot.slane %v698, 1
    %v700 = vadd.f32 %v698, %v699
    %v701 = vsel %vm69, %v651, 0.0
    %v702 = vrot.slane %v701, 4
    %v703 = vadd.f32 %v701, %v702
    %v704 = vrot.slane %v703, 2
    %v705 = vadd.f32 %v703, %v704
    %v706 = vrot.slane %v705, 1
    %v707 = vadd.f32 %v705, %v706
    %v716 = vsel %vm388, %v665, %v658
    %v717 = vsel %vm390, %v672, %v716
    %v718 = vsel %vm392, %v679, %v717
    %v719 = vsel %vm394, %v686, %v718
    %v720 = vsel %vm396, %v693, %v719
    %v721 = vsel %vm398, %v700, %v720
    %v722 = vsel %vm400, %v707, %v721
    %724 = vst.msk [vmem:[#allocation8] sm:$0xff] %vm69, %v722
    // Predicated region
    $region30: #{tpu_custom_call.1} parent=1 // pred_check
      _
    $region31: #{tpu_custom_call.1} parent=1 // pred_check_branch
      %726 = sbr.rel (0) target = $region33
    $region32: #{tpu_custom_call.1} parent=1 // pred_region
      %s728 = ssub.s32 128, 128
      %729 = vsyncadd [#allocation4], %s728
      %s731 = sshll.u32 [#allocation8], 4
      %s732 = int_to_ptr.vmem [resolvable:$true] %s731
      %734 = dma.vmem_to_hbm [thread:$0]  %s732, 128, %s4, [#allocation4]
    $region33: #{tpu_custom_call.1} parent=1 // pred_fallthru
      _
    // Predicated region
    $region34: #{tpu_custom_call.1} parent=1 // pred_check
      _
    $region35: #{tpu_custom_call.1} parent=1 // pred_check_branch
      %736 = sbr.rel (0) target = $region37
    $region36: #{tpu_custom_call.1} parent=1 // pred_region
      %737 = dma.done [#allocation4], 128
    $region37: #{tpu_custom_call.1} parent=1 // pred_fallthru
      _
    %738 = vsyncpa [#allocation3], 1
    %739 = vsyncpa [#allocation6], 1
    %740 = vsyncpa [#allocation4], 1

</llo_original>
